<compile_context>
chip_gen: v7x
topology: tpu7x:2x2x1
jax: 0.10.0
libtpu: 0.0.40
codegen_flags: <defaults>
</compile_context>

<pallas_src>
import functools

import jax
import jax.numpy as jnp
from jax.experimental import pallas as pl
from jax.experimental.pallas import tpu as pltpu


def _round_up(v, m):
    return (v + m - 1) // m * m


# ----------------------------- Pallas kernel -------------------------------

def _gcn1_fused_kernel(x_ref, adj_ref, w1_ref, b1_ref, w2_ref, b2_ref,
                       logp_ref, embed_ref, s1_ref, s2_ref,
                       *, tm, n_classes):
    p = pl.program_id(0)   # phase: 0 = layer 1 (+embed), 1 = layer 2 (+log_softmax)
    i = pl.program_id(1)   # node row tile

    @pl.when(jnp.logical_and(p == 0, i == 0))
    def _():
        # S1 = x @ W1, computed once and kept resident in VMEM for all row tiles.
        s1 = jnp.dot(x_ref[...], w1_ref[...], preferred_element_type=jnp.float32)
        s1_ref[...] = s1.astype(s1_ref.dtype)

    @pl.when(p == 0)
    def _():
        # h_tile = relu(adj_tile @ S1 + b1)   (bf16 MXU, f32 accumulate)
        h = jnp.dot(adj_ref[...], s1_ref[...], preferred_element_type=jnp.float32)
        h = jnp.maximum(h + b1_ref[...], 0.0)
        embed_ref[...] = h.astype(embed_ref.dtype)
        # S2 rows for this tile = h_tile @ W2  (feeds the layer-2 matmul in phase 1).
        s2 = jnp.dot(h.astype(w2_ref.dtype), w2_ref[...],
                     preferred_element_type=jnp.float32)
        row0 = pl.multiple_of(i * tm, tm)
        s2_ref[pl.ds(row0, tm), :] = s2.astype(s2_ref.dtype)

    @pl.when(p == 1)
    def _():
        # logits_tile = adj_tile @ S2 + b2, then masked log_softmax epilogue
        # (reductions/exp ride the XLU/EUP slots under the matmul/store path).
        logits = jnp.dot(adj_ref[...], s2_ref[...].astype(adj_ref.dtype),
                         preferred_element_type=jnp.float32)
        logits = logits + b2_ref[...]
        col = jax.lax.broadcasted_iota(jnp.int32, logits.shape, 1)
        masked = jnp.where(col < n_classes, logits, -1e30)   # hide padded class lanes
        m = jnp.max(masked, axis=-1, keepdims=True)
        e = jnp.exp(masked - m)
        lse = m + jnp.log(jnp.sum(e, axis=-1, keepdims=True))
        logp_ref[...] = (masked - lse).astype(logp_ref.dtype)


# ----------------------------- JAX wrapper ----------------------------------

def gcn1_forward(x, adj, params, *, row_tile=512):
    """GCN1.forward: (log_softmax(gc2(relu(gc1(x, adj)), adj), dim=1), embed)."""
    n, f = x.shape
    nhid = params["w1"].shape[1]
    nclass = params["w2"].shape[1]

    # Lane-dense padding (multiples of 128) for feature/hidden/class dims.
    fp = _round_up(f, 128)
    hp = _round_up(nhid, 128)
    cp = _round_up(nclass, 128)
    # Row tile over nodes; keep it a multiple of 16 (bf16 sublane packing).
    tm = min(_round_up(row_tile, 16), _round_up(n, 16))
    np_ = _round_up(n, tm)
    n_tiles = np_ // tm

    bf16 = jnp.bfloat16
    f32 = jnp.float32
    xb = jnp.zeros((np_, fp), bf16).at[:n, :f].set(x.astype(bf16))
    adjb = jnp.zeros((np_, np_), bf16).at[:n, :n].set(adj.astype(bf16))
    w1b = jnp.zeros((fp, hp), bf16).at[:f, :nhid].set(params["w1"].astype(bf16))
    b1p = jnp.zeros((1, hp), f32).at[0, :nhid].set(params["b1"].astype(f32))
    w2b = jnp.zeros((hp, cp), bf16).at[:nhid, :nclass].set(params["w2"].astype(bf16))
    b2p = jnp.zeros((1, cp), f32).at[0, :nclass].set(params["b2"].astype(f32))

    kernel = functools.partial(_gcn1_fused_kernel, tm=tm, n_classes=nclass)

    log_probs_p, embed_p = pl.pallas_call(
        kernel,
        out_shape=(
            jax.ShapeDtypeStruct((np_, cp), f32),   # log_probs (padded)
            jax.ShapeDtypeStruct((np_, hp), f32),   # embed     (padded)
        ),
        grid=(2, n_tiles),
        in_specs=[
            pl.BlockSpec((np_, fp), lambda p, i: (0, 0)),   # x   (resident, DMA'd once)
            pl.BlockSpec((tm, np_), lambda p, i: (i, 0)),   # adj row tile (pipelined)
            pl.BlockSpec((fp, hp), lambda p, i: (0, 0)),    # W1  (resident)
            pl.BlockSpec((1, hp), lambda p, i: (0, 0)),     # b1
            pl.BlockSpec((hp, cp), lambda p, i: (0, 0)),    # W2  (resident)
            pl.BlockSpec((1, cp), lambda p, i: (0, 0)),     # b2
        ],
        out_specs=(
            # log_probs: parked on block 0 during phase 0 (never copied back there),
            # then written / copied back tile-by-tile during phase 1.
            pl.BlockSpec((tm, cp), lambda p, i: (i * p, 0)),
            # embed: written tile-by-tile during phase 0, then parked on the last
            # (already written) tile during phase 1 so no stale buffer is copied back.
            pl.BlockSpec((tm, hp),
                         lambda p, i: (i * (1 - p) + (n_tiles - 1) * p, 0)),
        ),
        scratch_shapes=[
            pltpu.VMEM((np_, hp), bf16),   # S1 = x @ W1          (resident across grid)
            pltpu.VMEM((np_, cp), f32),    # S2 = relu(adj@S1+b1) @ W2
        ],
        compiler_params=pltpu.CompilerParams(
            # Scratch carried across row tiles / phases -> both axes sequential.
            dimension_semantics=("arbitrary", "arbitrary"),
            # Raise the scoped-VMEM limit (default 16/32 MiB) but stay under v7x's
            # 64 MiB physical per-TensorCore budget.
            vmem_limit_bytes=48 * 1024 * 1024,
        ),
    )(xb, adjb, w1b, b1p, w2b, b2p)

    return log_probs_p[:n, :nclass], embed_p[:n, :nhid]


# ----------------------------- Parameter init ------------------------------

def init_params(key, nfeat, nhid, nclass):
    # Mirrors GraphConvolution.reset_parameters: U(-stdv, stdv), stdv = 1/sqrt(out_features)
    k1, k2, k3, k4 = jax.random.split(key, 4)
    s1 = 1.0 / jnp.sqrt(nhid)
    s2 = 1.0 / jnp.sqrt(nclass)
    return {
        "w1": jax.random.uniform(k1, (nfeat, nhid), jnp.float32, -s1, s1),
        "b1": jax.random.uniform(k2, (nhid,), jnp.float32, -s1, s1),
        "w2": jax.random.uniform(k3, (nhid, nclass), jnp.float32, -s2, s2),
        "b2": jax.random.uniform(k4, (nclass,), jnp.float32, -s2, s2),
    }


# ----------------------------- Main ----------------------------------------

if __name__ == "__main__":
    # Small but non-trivial: exercises row padding (80 -> 96) and 3 row tiles of 32.
    N, NFEAT, NHID, NCLASS = 80, 32, 32, 8

    key = jax.random.PRNGKey(0)
    kx, kadj, kp = jax.random.split(key, 3)

    x = jax.random.normal(kx, (N, NFEAT), jnp.float32)

    # Symmetric, row-normalized adjacency with self loops (deterministic).
    a = jax.random.uniform(kadj, (N, N), jnp.float32)
    a = (a + a.T) * 0.5 + jnp.eye(N, dtype=jnp.float32)
    adj = a / jnp.sum(a, axis=1, keepdims=True)

    params = init_params(kp, NFEAT, NHID, NCLASS)

    fwd = jax.jit(functools.partial(gcn1_forward, row_tile=32))
    log_probs, embed = fwd(x, adj, params)
    jax.block_until_ready((log_probs, embed))

    assert log_probs.shape == (N, NCLASS)
    assert embed.shape == (N, NHID)
    assert bool(jnp.all(jnp.isfinite(log_probs)))
    # log_softmax rows exponentiate-sum to 1 (normalization done in f32 inside the kernel).
    assert bool(jnp.allclose(jnp.sum(jnp.exp(log_probs), axis=1), 1.0, atol=1e-3))

    # Pure-JAX f32 reference (loose tolerance: kernel uses bf16 inputs, f32 accumulation).
    s1_ref = x @ params["w1"]
    h_ref = jnp.maximum(adj @ s1_ref + params["b1"], 0.0)
    logits_ref = adj @ (h_ref @ params["w2"]) + params["b2"]
    lp_ref = jax.nn.log_softmax(logits_ref, axis=1)
    assert bool(jnp.allclose(embed, h_ref, atol=0.1, rtol=0.1))
    assert bool(jnp.allclose(log_probs, lp_ref, atol=0.1, rtol=0.1))

    print("KERNEL_OK")
</pallas_src>

<mosaic_0001>
module attributes {stable_mosaic.version = 11 : i64} {
  func.func @_gcn1_fused_kernel(%arg0: i32, %arg1: i32, %arg2: memref<96x128xbf16, #tpu.memory_space<vmem>>, %arg3: memref<32x96xbf16, #tpu.memory_space<vmem>>, %arg4: memref<128x128xbf16, #tpu.memory_space<vmem>>, %arg5: memref<1x128xf32, #tpu.memory_space<vmem>>, %arg6: memref<128x128xbf16, #tpu.memory_space<vmem>>, %arg7: memref<1x128xf32, #tpu.memory_space<vmem>>, %arg8: memref<32x128xf32, #tpu.memory_space<vmem>>, %arg9: memref<32x128xf32, #tpu.memory_space<vmem>>, %arg10: memref<96x128xbf16, #tpu.memory_space<vmem>>, %arg11: memref<96x128xf32, #tpu.memory_space<vmem>>) attributes {dimension_semantics = [#tpu.dimension_semantics<arbitrary>, #tpu.dimension_semantics<arbitrary>], iteration_bounds = array<i64: 2, 3>, scalar_prefetch = 0 : i64, scratch_operands = 2 : i64, tpu.core_type = #tpu.core_type<tc>, window_params = [{pipeline_mode = #tpu.pipeline_mode<synchronous>, transform_indices = @transform_0, window_bounds = array<i64: 96, 128>}, {transform_indices = @transform_1, window_bounds = array<i64: 32, 96>}, {pipeline_mode = #tpu.pipeline_mode<synchronous>, transform_indices = @transform_2, window_bounds = array<i64: 128, 128>}, {pipeline_mode = #tpu.pipeline_mode<synchronous>, transform_indices = @transform_3, window_bounds = array<i64: 1, 128>}, {pipeline_mode = #tpu.pipeline_mode<synchronous>, transform_indices = @transform_4, window_bounds = array<i64: 128, 128>}, {pipeline_mode = #tpu.pipeline_mode<synchronous>, transform_indices = @transform_5, window_bounds = array<i64: 1, 128>}, {transform_indices = @transform_6, window_bounds = array<i64: 32, 128>}, {transform_indices = @transform_7, window_bounds = array<i64: 32, 128>}]} {
    %c0_i32 = arith.constant 0 : i32
    %0 = arith.cmpi eq, %arg0, %c0_i32 : i32
    %c0_i32_0 = arith.constant 0 : i32
    %1 = arith.cmpi eq, %arg1, %c0_i32_0 : i32
    %2 = arith.andi %0, %1 : i1
    %3 = arith.extui %2 : i1 to i32
    %c0_i32_1 = arith.constant 0 : i32
    %4 = arith.cmpi ne, %3, %c0_i32_1 : i32
    scf.if %4 {
      %c0 = arith.constant 0 : index
      %c0_5 = arith.constant 0 : index
      %11 = vector.load %arg2[%c0, %c0_5] : memref<96x128xbf16, #tpu.memory_space<vmem>>, vector<96x128xbf16>
      %c0_6 = arith.constant 0 : index
      %c0_7 = arith.constant 0 : index
      %12 = vector.load %arg4[%c0_6, %c0_7] : memref<128x128xbf16, #tpu.memory_space<vmem>>, vector<128x128xbf16>
      %cst = arith.constant dense<0.000000e+00> : vector<96x128xf32>
      %13 = tpu.matmul %11, %12, %cst {dimension_numbers = #tpu.dot_dimension_numbers<[1], [0], [0], [1], [0, 0, 1, 1], [], []>} : vector<96x128xbf16>, vector<128x128xbf16>, vector<96x128xf32> -> vector<96x128xf32>
      %14 = arith.truncf %13 : vector<96x128xf32> to vector<96x128xbf16>
      %c0_8 = arith.constant 0 : index
      %c0_9 = arith.constant 0 : index
      %15 = vector.load %arg10[%c0_8, %c0_9] : memref<96x128xbf16, #tpu.memory_space<vmem>>, vector<96x128xbf16>
      tpu.vector_store %arg10[%c0_8, %c0_9], %14 {strides = array<i32>} : memref<96x128xbf16, #tpu.memory_space<vmem>>, vector<96x128xbf16>,
    } else {
    }
    %c0_i32_2 = arith.constant 0 : i32
    %5 = arith.cmpi eq, %arg0, %c0_i32_2 : i32
    %6 = arith.extui %5 : i1 to i32
    %c0_i32_3 = arith.constant 0 : i32
    %7 = arith.cmpi ne, %6, %c0_i32_3 : i32
    scf.if %7 {
      %c0 = arith.constant 0 : index
      %c0_5 = arith.constant 0 : index
      %11 = vector.load %arg3[%c0, %c0_5] : memref<32x96xbf16, #tpu.memory_space<vmem>>, vector<32x96xbf16>
      %c0_6 = arith.constant 0 : index
      %c0_7 = arith.constant 0 : index
      %12 = vector.load %arg10[%c0_6, %c0_7] : memref<96x128xbf16, #tpu.memory_space<vmem>>, vector<96x128xbf16>
      %cst = arith.constant dense<0.000000e+00> : vector<32x128xf32>
      %13 = tpu.matmul %11, %12, %cst {dimension_numbers = #tpu.dot_dimension_numbers<[1], [0], [0], [1], [0, 0, 1, 1], [], []>} : vector<32x96xbf16>, vector<96x128xbf16>, vector<32x128xf32> -> vector<32x128xf32>
      %c0_8 = arith.constant 0 : index
      %c0_9 = arith.constant 0 : index
      %14 = vector.load %arg5[%c0_8, %c0_9] : memref<1x128xf32, #tpu.memory_space<vmem>>, vector<1x128xf32>
      %15 = vector.broadcast %14 : vector<1x128xf32> to vector<32x128xf32>
      %16 = arith.addf %13, %15 : vector<32x128xf32>
      %cst_10 = arith.constant 0.000000e+00 : f32
      %17 = vector.broadcast %cst_10 : f32 to vector<32x128xf32>
      %18 = arith.maximumf %16, %17 : vector<32x128xf32>
      %c0_11 = arith.constant 0 : index
      %c0_12 = arith.constant 0 : index
      %19 = vector.load %arg9[%c0_11, %c0_12] : memref<32x128xf32, #tpu.memory_space<vmem>>, vector<32x128xf32>
      tpu.vector_store %arg9[%c0_11, %c0_12], %18 {strides = array<i32>} : memref<32x128xf32, #tpu.memory_space<vmem>>, vector<32x128xf32>,
      %20 = arith.truncf %18 : vector<32x128xf32> to vector<32x128xbf16>
      %c0_13 = arith.constant 0 : index
      %c0_14 = arith.constant 0 : index
      %21 = vector.load %arg6[%c0_13, %c0_14] : memref<128x128xbf16, #tpu.memory_space<vmem>>, vector<128x128xbf16>
      %cst_15 = arith.constant dense<0.000000e+00> : vector<32x128xf32>
      %22 = tpu.matmul %20, %21, %cst_15 {dimension_numbers = #tpu.dot_dimension_numbers<[1], [0], [0], [1], [0, 0, 1, 1], [], []>} : vector<32x128xbf16>, vector<128x128xbf16>, vector<32x128xf32> -> vector<32x128xf32>
      %c32_i32 = arith.constant 32 : i32
      %23 = arith.muli %arg1, %c32_i32 : i32
      %24 = tpu.assume_multiple %23, 32 : i32
      %25 = arith.index_cast %24 : i32 to index
      %c0_16 = arith.constant 0 : index
      %26 = vector.load %arg11[%25, %c0_16] : memref<96x128xf32, #tpu.memory_space<vmem>>, vector<32x128xf32>
      tpu.vector_store %arg11[%25, %c0_16], %22 {strides = array<i32>} : memref<96x128xf32, #tpu.memory_space<vmem>>, vector<32x128xf32>,
    } else {
    }
    %c1_i32 = arith.constant 1 : i32
    %8 = arith.cmpi eq, %arg0, %c1_i32 : i32
    %9 = arith.extui %8 : i1 to i32
    %c0_i32_4 = arith.constant 0 : i32
    %10 = arith.cmpi ne, %9, %c0_i32_4 : i32
    scf.if %10 {
      %c0 = arith.constant 0 : index
      %c0_5 = arith.constant 0 : index
      %11 = vector.load %arg3[%c0, %c0_5] : memref<32x96xbf16, #tpu.memory_space<vmem>>, vector<32x96xbf16>
      %c0_6 = arith.constant 0 : index
      %c0_7 = arith.constant 0 : index
      %12 = vector.load %arg11[%c0_6, %c0_7] : memref<96x128xf32, #tpu.memory_space<vmem>>, vector<96x128xf32>
      %13 = arith.truncf %12 : vector<96x128xf32> to vector<96x128xbf16>
      %cst = arith.constant dense<0.000000e+00> : vector<32x128xf32>
      %14 = tpu.matmul %11, %13, %cst {dimension_numbers = #tpu.dot_dimension_numbers<[1], [0], [0], [1], [0, 0, 1, 1], [], []>} : vector<32x96xbf16>, vector<96x128xbf16>, vector<32x128xf32> -> vector<32x128xf32>
      %c0_8 = arith.constant 0 : index
      %c0_9 = arith.constant 0 : index
      %15 = vector.load %arg7[%c0_8, %c0_9] : memref<1x128xf32, #tpu.memory_space<vmem>>, vector<1x128xf32>
      %16 = vector.broadcast %15 : vector<1x128xf32> to vector<32x128xf32>
      %17 = arith.addf %14, %16 : vector<32x128xf32>
      %18 = tpu.iota {dimensions = array<i32: 1>} : vector<32x128xi32>
      %c8_i32 = arith.constant 8 : i32
      %19 = vector.broadcast %c8_i32 : i32 to vector<32x128xi32>
      %20 = arith.cmpi slt, %18, %19 : vector<32x128xi32>
      %cst_10 = arith.constant -1.000000e+30 : f32
      %21 = vector.broadcast %cst_10 : f32 to vector<32x128xf32>
      %22 = arith.select %20, %17, %21 : vector<32x128xi1>, vector<32x128xf32>
      %cst_11 = arith.constant dense<0xFF800000> : vector<32xf32>
      %23 = vector.multi_reduction <maximumf>, %22, %cst_11 [1] : vector<32x128xf32> to vector<32xf32>
      %24 = vector.shape_cast %23 : vector<32xf32> to vector<32x1xf32>
      %25 = vector.broadcast %24 : vector<32x1xf32> to vector<32x128xf32>
      %26 = arith.subf %22, %25 : vector<32x128xf32>
      %27 = math.exp %26 : vector<32x128xf32>
      %cst_12 = arith.constant dense<0.000000e+00> : vector<32xf32>
      %28 = vector.multi_reduction <add>, %27, %cst_12 [1] : vector<32x128xf32> to vector<32xf32>
      %29 = vector.shape_cast %28 : vector<32xf32> to vector<32x1xf32>
      %30 = math.log %29 : vector<32x1xf32>
      %31 = arith.addf %24, %30 : vector<32x1xf32>
      %32 = vector.broadcast %31 : vector<32x1xf32> to vector<32x128xf32>
      %33 = arith.subf %22, %32 : vector<32x128xf32>
      %c0_13 = arith.constant 0 : index
      %c0_14 = arith.constant 0 : index
      %34 = vector.load %arg8[%c0_13, %c0_14] : memref<32x128xf32, #tpu.memory_space<vmem>>, vector<32x128xf32>
      tpu.vector_store %arg8[%c0_13, %c0_14], %33 {strides = array<i32>} : memref<32x128xf32, #tpu.memory_space<vmem>>, vector<32x128xf32>,
    } else {
    }
    return
  }
  func.func @transform_0(%arg0: i32, %arg1: i32) -> (i32, i32) {
    %c0_i32 = arith.constant 0 : i32
    %c0_i32_0 = arith.constant 0 : i32
    %c0_i32_1 = arith.constant 0 : i32
    return %c0_i32, %c0_i32_0 : i32, i32
  }
  func.func @transform_1(%arg0: i32, %arg1: i32) -> (i32, i32) {
    %c0_i32 = arith.constant 0 : i32
    %c0_i32_0 = arith.constant 0 : i32
    return %arg1, %c0_i32 : i32, i32
  }
  func.func @transform_2(%arg0: i32, %arg1: i32) -> (i32, i32) {
    %c0_i32 = arith.constant 0 : i32
    %c0_i32_0 = arith.constant 0 : i32
    %c0_i32_1 = arith.constant 0 : i32
    return %c0_i32, %c0_i32_0 : i32, i32
  }
  func.func @transform_3(%arg0: i32, %arg1: i32) -> (i32, i32) {
    %c0_i32 = arith.constant 0 : i32
    %c0_i32_0 = arith.constant 0 : i32
    %c0_i32_1 = arith.constant 0 : i32
    return %c0_i32, %c0_i32_0 : i32, i32
  }
  func.func @transform_4(%arg0: i32, %arg1: i32) -> (i32, i32) {
    %c0_i32 = arith.constant 0 : i32
    %c0_i32_0 = arith.constant 0 : i32
    %c0_i32_1 = arith.constant 0 : i32
    return %c0_i32, %c0_i32_0 : i32, i32
  }
  func.func @transform_5(%arg0: i32, %arg1: i32) -> (i32, i32) {
    %c0_i32 = arith.constant 0 : i32
    %c0_i32_0 = arith.constant 0 : i32
    %c0_i32_1 = arith.constant 0 : i32
    return %c0_i32, %c0_i32_0 : i32, i32
  }
  func.func @transform_6(%arg0: i32, %arg1: i32) -> (i32, i32) {
    %0 = arith.muli %arg1, %arg0 : i32
    %c0_i32 = arith.constant 0 : i32
    %c0_i32_0 = arith.constant 0 : i32
    return %0, %c0_i32 : i32, i32
  }
  func.func @transform_7(%arg0: i32, %arg1: i32) -> (i32, i32) {
    %c1_i32 = arith.constant 1 : i32
    %0 = arith.subi %c1_i32, %arg0 : i32
    %1 = arith.muli %arg1, %0 : i32
    %c2_i32 = arith.constant 2 : i32
    %2 = arith.muli %c2_i32, %arg0 : i32
    %3 = arith.addi %1, %2 : i32
    %c0_i32 = arith.constant 0 : i32
    %c0_i32_0 = arith.constant 0 : i32
    return %3, %c0_i32 : i32, i32
  }
}

</mosaic_0001>

<llo_original>
// kernel: gcn1_forward.1
$region0: #{gcn1_forward.1}
  #allocation0 [shape = 'u32[]', space=smem, size = 0x4, offset = 0x4, fixed_abs, tag = 'smem constant byte address 0x4 - core index']
  #allocation1 [shape = 'u32[144,128]{1,0:T(1,128)}', space=vmem, size = 0x12000, scoped, tag = 'internal scratch']
  #allocation2 [shape = 'bf16[96,128]{1,0:T(16,128)(2,1)}', space=vmem, size = 0x6000, scoped, tag = 'scratch operand']
  #allocation3 [shape = 'f32[96,128]{1,0:T(8,128)}', space=vmem, size = 0xc000, scoped, tag = 'scratch operand']
  %s0 = inlined_call_operand.vmem [shape: bf16[96,128], index: 0, kind: input, shape index: {}]
  %s1 = inlined_call_operand.vmem [shape: bf16[96,96], index: 1, kind: input, shape index: {}]
  %s2 = inlined_call_operand.vmem [shape: bf16[128,128], index: 2, kind: input, shape index: {}]
  %s3 = inlined_call_operand.vmem [shape: f32[1,128], index: 3, kind: input, shape index: {}]
  %s4 = inlined_call_operand.vmem [shape: bf16[128,128], index: 4, kind: input, shape index: {}]
  %s5 = inlined_call_operand.vmem [shape: f32[1,128], index: 5, kind: input, shape index: {}]
  %s6 = inlined_call_operand.vmem [shape: f32[96,128], index: 6, kind: output, shape index: {0}]
  %s7 = inlined_call_operand.vmem [shape: f32[96,128], index: 7, kind: output, shape index: {1}]
  %8 = xla_tuple %s6, %s7
  %s9 = sld [smem:[#allocation0]]
  $region77: #{gcn1_forward.1} parent=0
    _
  %s11 = ssub.s32 1, %s9
  %s12 = scalar_select 0, %s11, %s9
  loop: start=0, step=1, limit=8
  $region2: #{gcn1_forward.1} parent=0 // loop_pre_header
    _
  $region3: #{gcn1_forward.1} parent=0 // loop_header
    %s14 = sphi 0, %s18
    %p15 = scmp.ge.s32.totalorder %s14, 8
    %s21 = sphi 0, %s33
    %s22 = sphi 0, %s29
    %s23 = sphi 0, %s21
    %s24 = sphi 0, %s22
    %s25 = sphi 0, %s23
    %s26 = sphi 0, %s24
    %s34 = sphi 0, %s34
    %s36 = sphi 0, %s34
    %s37 = sphi 0, %s36
    %s51 = sphi 0, %s37
    %s57 = sphi 0, %s59
    %s60 = sphi 0, %s57
    %s61 = sphi 0, %s60
    %s77 = sphi 0, %s61
    %s81 = sphi 0, %s81
    %s83 = sphi 0, %s81
    %s84 = sphi 0, %s83
    %s98 = sphi 0, %s84
    %s102 = sphi 0, %s102
    %s104 = sphi 0, %s102
    %s105 = sphi 0, %s104
    %s119 = sphi 0, %s105
    %s123 = sphi 0, %s123
    %s125 = sphi 0, %s123
    %s126 = sphi 0, %s125
    %s140 = sphi 0, %s126
    %s144 = sphi 0, %s144
    %s146 = sphi 0, %s144
    %s147 = sphi 0, %s146
    %s161 = sphi 0, %s147
    %s169 = sphi 0, %s171
    %s172 = sphi 0, %s169
    %s173 = sphi 0, %s172
    %s189 = sphi 0, %s173
    %s203 = sphi 0, %s205
    %s206 = sphi 0, %s203
    %s207 = sphi 0, %s206
    %s223 = sphi 0, %s207
  $region4: #{gcn1_forward.1} parent=0 // loop_header_branch
    %17 = sbr.rel (%p15) target = $region8
  $region5: #{gcn1_forward.1} parent=0 // loop_body
    %s19 = ssub.s32 %s14, 1
    %s20 = ssub.s32 %s14, 2
    %s27 = sadd.s32 1, %s22
    %p28 = scmp.ge.s32.totalorder %s27, 3
    %s29 = scalar_select %p28, 0, %s27
    %s30 = sadd.s32 1, %s21
    %s31 = scalar_select %p28, %s30, %s21
    %p32 = scmp.ge.s32.totalorder %s31, 2
    %s33 = scalar_select %p32, 0, %s31
    %s35 = sadd.s32 %s34, 1
    %p38 = scmp.eq.s32.totalorder %s14, 5
    %p39 = scmp.ne.s32.totalorder %s34, %s36
    %p40 = scmp.eq.s32.totalorder %s14, 0
    %p41 = por %p39, %p40
    %p42 = scmp.ne.s32.totalorder %s34, %s36
    %p43 = scmp.eq.s32.totalorder %s19, 5
    %p44 = por %p42, %p43
    %p45 = scmp.ne.s32.totalorder %s36, %s37
    %p46 = scmp.eq.s32.totalorder %s19, 0
    %p47 = por %p45, %p46
    %p48 = scmp.ne.s32.totalorder %s36, %s37
    %p49 = scmp.eq.s32.totalorder %s20, 5
    %p50 = por %p48, %p49
    %p52 = scmp.ne.s32.totalorder %s37, %s51
    %p53 = scmp.eq.s32.totalorder %s20, 0
    %p54 = por %p52, %p53
    %s55 = ssub.s32 %s22, %s29
    %p56 = scmp.eq.s32.totalorder %s55, 0
    %s58 = sadd.s32 %s57, 1
    %s59 = scalar_select %p56, %s57, %s58
    %p62 = pneg %p56
    %p63 = scmp.eq.s32.totalorder %s14, 5
    %p64 = por %p62, %p63
    %p65 = scmp.ne.s32.totalorder %s57, %s60
    %p66 = scmp.eq.s32.totalorder %s14, 0
    %p67 = por %p65, %p66
    %p68 = scmp.ne.s32.totalorder %s57, %s60
    %p69 = scmp.eq.s32.totalorder %s19, 5
    %p70 = por %p68, %p69
    %p71 = scmp.ne.s32.totalorder %s60, %s61
    %p72 = scmp.eq.s32.totalorder %s19, 0
    %p73 = por %p71, %p72
    %p74 = scmp.ne.s32.totalorder %s60, %s61
    %p75 = scmp.eq.s32.totalorder %s20, 5
    %p76 = por %p74, %p75
    %p78 = scmp.ne.s32.totalorder %s61, %s77
    %p79 = scmp.eq.s32.totalorder %s20, 0
    %p80 = por %p78, %p79
    %s82 = sadd.s32 %s81, 1
    %p85 = scmp.eq.s32.totalorder %s14, 5
    %p86 = scmp.ne.s32.totalorder %s81, %s83
    %p87 = scmp.eq.s32.totalorder %s14, 0
    %p88 = por %p86, %p87
    %p89 = scmp.ne.s32.totalorder %s81, %s83
    %p90 = scmp.eq.s32.totalorder %s19, 5
    %p91 = por %p89, %p90
    %p92 = scmp.ne.s32.totalorder %s83, %s84
    %p93 = scmp.eq.s32.totalorder %s19, 0
    %p94 = por %p92, %p93
    %p95 = scmp.ne.s32.totalorder %s83, %s84
    %p96 = scmp.eq.s32.totalorder %s20, 5
    %p97 = por %p95, %p96
    %p99 = scmp.ne.s32.totalorder %s84, %s98
    %p100 = scmp.eq.s32.totalorder %s20, 0
    %p101 = por %p99, %p100
    %s103 = sadd.s32 %s102, 1
    %p106 = scmp.eq.s32.totalorder %s14, 5
    %p107 = scmp.ne.s32.totalorder %s102, %s104
    %p108 = scmp.eq.s32.totalorder %s14, 0
    %p109 = por %p107, %p108
    %p110 = scmp.ne.s32.totalorder %s102, %s104
    %p111 = scmp.eq.s32.totalorder %s19, 5
    %p112 = por %p110, %p111
    %p113 = scmp.ne.s32.totalorder %s104, %s105
    %p114 = scmp.eq.s32.totalorder %s19, 0
    %p115 = por %p113, %p114
    %p116 = scmp.ne.s32.totalorder %s104, %s105
    %p117 = scmp.eq.s32.totalorder %s20, 5
    %p118 = por %p116, %p117
    %p120 = scmp.ne.s32.totalorder %s105, %s119
    %p121 = scmp.eq.s32.totalorder %s20, 0
    %p122 = por %p120, %p121
    %s124 = sadd.s32 %s123, 1
    %p127 = scmp.eq.s32.totalorder %s14, 5
    %p128 = scmp.ne.s32.totalorder %s123, %s125
    %p129 = scmp.eq.s32.totalorder %s14, 0
    %p130 = por %p128, %p129
    %p131 = scmp.ne.s32.totalorder %s123, %s125
    %p132 = scmp.eq.s32.totalorder %s19, 5
    %p133 = por %p131, %p132
    %p134 = scmp.ne.s32.totalorder %s125, %s126
    %p135 = scmp.eq.s32.totalorder %s19, 0
    %p136 = por %p134, %p135
    %p137 = scmp.ne.s32.totalorder %s125, %s126
    %p138 = scmp.eq.s32.totalorder %s20, 5
    %p139 = por %p137, %p138
    %p141 = scmp.ne.s32.totalorder %s126, %s140
    %p142 = scmp.eq.s32.totalorder %s20, 0
    %p143 = por %p141, %p142
    %s145 = sadd.s32 %s144, 1
    %p148 = scmp.eq.s32.totalorder %s14, 5
    %p149 = scmp.ne.s32.totalorder %s144, %s146
    %p150 = scmp.eq.s32.totalorder %s14, 0
    %p151 = por %p149, %p150
    %p152 = scmp.ne.s32.totalorder %s144, %s146
    %p153 = scmp.eq.s32.totalorder %s19, 5
    %p154 = por %p152, %p153
    %p155 = scmp.ne.s32.totalorder %s146, %s147
    %p156 = scmp.eq.s32.totalorder %s19, 0
    %p157 = por %p155, %p156
    %p158 = scmp.ne.s32.totalorder %s146, %s147
    %p159 = scmp.eq.s32.totalorder %s20, 5
    %p160 = por %p158, %p159
    %p162 = scmp.ne.s32.totalorder %s147, %s161
    %p163 = scmp.eq.s32.totalorder %s20, 0
    %p164 = por %p162, %p163
    %s165 = smul.u32 %s22, %s21
    %s166 = smul.u32 %s29, %s33
    %s167 = ssub.s32 %s165, %s166
    %p168 = scmp.eq.s32.totalorder %s167, 0
    %s170 = sadd.s32 %s169, 1
    %s171 = scalar_select %p168, %s169, %s170
    %p174 = pneg %p168
    %p175 = scmp.eq.s32.totalorder %s14, 5
    %p176 = por %p174, %p175
    %p177 = scmp.ne.s32.totalorder %s169, %s172
    %p178 = scmp.eq.s32.totalorder %s14, 0
    %p179 = por %p177, %p178
    %p180 = scmp.ne.s32.totalorder %s169, %s172
    %p181 = scmp.eq.s32.totalorder %s19, 5
    %p182 = por %p180, %p181
    %p183 = scmp.ne.s32.totalorder %s172, %s173
    %p184 = scmp.eq.s32.totalorder %s19, 0
    %p185 = por %p183, %p184
    %p186 = scmp.ne.s32.totalorder %s172, %s173
    %p187 = scmp.eq.s32.totalorder %s20, 5
    %p188 = por %p186, %p187
    %p190 = scmp.ne.s32.totalorder %s173, %s189
    %p191 = scmp.eq.s32.totalorder %s20, 0
    %p192 = por %p190, %p191
    %s193 = ssub.s32 1, %s21
    %s194 = smul.u32 %s22, %s193
    %s195 = smul.u32 %s21, 2
    %s196 = sadd.s32 %s194, %s195
    %s197 = ssub.s32 1, %s33
    %s198 = smul.u32 %s29, %s197
    %s199 = smul.u32 %s33, 2
    %s200 = sadd.s32 %s198, %s199
    %s201 = ssub.s32 %s196, %s200
    %p202 = scmp.eq.s32.totalorder %s201, 0
    %s204 = sadd.s32 %s203, 1
    %s205 = scalar_select %p202, %s203, %s204
    %p208 = pneg %p202
    %p209 = scmp.eq.s32.totalorder %s14, 5
    %p210 = por %p208, %p209
    %p211 = scmp.ne.s32.totalorder %s203, %s206
    %p212 = scmp.eq.s32.totalorder %s14, 0
    %p213 = por %p211, %p212
    %p214 = scmp.ne.s32.totalorder %s203, %s206
    %p215 = scmp.eq.s32.totalorder %s19, 5
    %p216 = por %p214, %p215
    %p217 = scmp.ne.s32.totalorder %s206, %s207
    %p218 = scmp.eq.s32.totalorder %s19, 0
    %p219 = por %p217, %p218
    %p220 = scmp.ne.s32.totalorder %s206, %s207
    %p221 = scmp.eq.s32.totalorder %s20, 5
    %p222 = por %p220, %p221
    %p224 = scmp.ne.s32.totalorder %s207, %s223
    %p225 = scmp.eq.s32.totalorder %s20, 0
    %p226 = por %p224, %p225
    %p227 = scmp.le.s32.totalorder 1, %s14
    %p228 = scmp.lt.s32.totalorder %s14, 7
    %p229 = pnand %p227, %p228
    %p230 = pneg %p229
    // Predicated region
    $region9: #{gcn1_forward.1} parent=5 // pred_check
      _
    $region10: #{gcn1_forward.1} parent=5 // pred_check_branch
      %232 = sbr.rel (%p229) target = $region12
    $region11: #{gcn1_forward.1} parent=5 // pred_region
      %s233 = ssub.s32 %s14, 1
      // Predicated region
      $region13: #{gcn1_forward.1} parent=11 // pred_check
        %p234 = pneg %p47
      $region14: #{gcn1_forward.1} parent=11 // pred_check_branch
        %236 = sbr.rel (%p234) target = $region16
      $region15: #{gcn1_forward.1} parent=11 // pred_region
        _
      $region16: #{gcn1_forward.1} parent=11 // pred_fallthru
        _
      // Predicated region
      $region17: #{gcn1_forward.1} parent=11 // pred_check
        %p237 = pneg %p94
      $region18: #{gcn1_forward.1} parent=11 // pred_check_branch
        %239 = sbr.rel (%p237) target = $region20
      $region19: #{gcn1_forward.1} parent=11 // pred_region
        _
      $region20: #{gcn1_forward.1} parent=11 // pred_fallthru
        _
      // Predicated region
      $region21: #{gcn1_forward.1} parent=11 // pred_check
        %p240 = pneg %p115
      $region22: #{gcn1_forward.1} parent=11 // pred_check_branch
        %242 = sbr.rel (%p240) target = $region24
      $region23: #{gcn1_forward.1} parent=11 // pred_region
        _
      $region24: #{gcn1_forward.1} parent=11 // pred_fallthru
        _
      // Predicated region
      $region25: #{gcn1_forward.1} parent=11 // pred_check
        %p243 = pneg %p136
      $region26: #{gcn1_forward.1} parent=11 // pred_check_branch
        %245 = sbr.rel (%p243) target = $region28
      $region27: #{gcn1_forward.1} parent=11 // pred_region
        _
      $region28: #{gcn1_forward.1} parent=11 // pred_fallthru
        _
      // Predicated region
      $region29: #{gcn1_forward.1} parent=11 // pred_check
        %p246 = pneg %p157
      $region30: #{gcn1_forward.1} parent=11 // pred_check_branch
        %248 = sbr.rel (%p246) target = $region32
      $region31: #{gcn1_forward.1} parent=11 // pred_region
        _
      $region32: #{gcn1_forward.1} parent=11 // pred_fallthru
        _
    $region12: #{gcn1_forward.1} parent=5 // pred_fallthru
      _
    %p249 = scmp.lt.s32.totalorder %s14, 6
    // Predicated region
    $region33: #{gcn1_forward.1} parent=5 // pred_check
      %p250 = pneg %p249
    $region34: #{gcn1_forward.1} parent=5 // pred_check_branch
      %252 = sbr.rel (%p250) target = $region36
    $region35: #{gcn1_forward.1} parent=5 // pred_region
      // Predicated region
      $region37: #{gcn1_forward.1} parent=35 // pred_check
        %p253 = pneg %p67
      $region38: #{gcn1_forward.1} parent=35 // pred_check_branch
        %255 = sbr.rel (%p253) target = $region40
      $region39: #{gcn1_forward.1} parent=35 // pred_region
        %s256 = smul.u32 4, %s22
        %p257 = scmp.lt.s32.totalorder %s256, 11
        %s258 = scalar_select %p257, %s256, 11
        %s259 = smul.addr %s258, 4
        %s260 = scalar_lea.vmem %s1, %s259
        %s261 = smul.u32 4, %s22
      $region40: #{gcn1_forward.1} parent=35 // pred_fallthru
        _
    $region36: #{gcn1_forward.1} parent=5 // pred_fallthru
      _
    %p262 = scmp.le.s32.totalorder 1, %s14
    %p263 = scmp.lt.s32.totalorder %s14, 7
    %p264 = pnand %p262, %p263
    %p265 = pneg %p264
    // Predicated region
    $region41: #{gcn1_forward.1} parent=5 // pred_check
      _
    $region42: #{gcn1_forward.1} parent=5 // pred_check_branch
      %267 = sbr.rel (%p264) target = $region44
    $region43: #{gcn1_forward.1} parent=5 // pred_region
      %s268 = ssub.s32 %s14, 1
      %p269 = pneg %p47
      %p270 = pneg %p44
      %s271 = smul.u32 4, %s24
      %p272 = scmp.lt.s32.totalorder %s271, 11
      %s273 = scalar_select %p272, %s271, 11
      %s274 = smul.addr %s273, 4
      %s275 = scalar_lea.vmem %s1, %s274
      %p276 = pneg %p73
      %p277 = pneg %p70
      %p278 = pneg %p94
      %p279 = pneg %p91
      %p280 = pneg %p115
      %p281 = pneg %p112
      %p282 = pneg %p136
      %p283 = pneg %p133
      %p284 = pneg %p157
      %p285 = pneg %p154
      %p286 = pneg %p185
      %p287 = pneg %p182
      %s288 = smul.u32 %s24, %s23
      %s289 = smul.u32 4, %s288
      %p290 = scmp.lt.s32.totalorder %s289, 11
      %s291 = scalar_select %p290, %s289, 11
      %s292 = smul.addr %s291, 8
      %s293 = scalar_lea.vmem %s6, %s292
      %p294 = pneg %p219
      %p295 = pneg %p216
      %s296 = ssub.s32 1, %s23
      %s297 = smul.u32 %s24, %s296
      %s298 = smul.u32 %s23, 2
      %s299 = sadd.s32 %s297, %s298
      %s300 = smul.u32 4, %s299
      %p301 = scmp.lt.s32.totalorder %s300, 11
      %s302 = scalar_select %p301, %s300, 11
      %s303 = smul.addr %s302, 8
      %s304 = scalar_lea.vmem %s7, %s303
      %s305 = smul.u32 4, %s24
      %p306 = scmp.lt.s32.totalorder %s305, 11
      %s307 = scalar_select %p306, %s305, 11
      %s308 = smul.addr %s307, 4
      %s309 = scalar_lea.vmem %s1, %s308
      %s310 = smul.u32 4, %s24
      %s311 = smul.u32 %s24, %s23
      %s312 = smul.u32 4, %s311
      %p313 = scmp.lt.s32.totalorder %s312, 11
      %s314 = scalar_select %p313, %s312, 11
      %s315 = smul.addr %s314, 8
      %s316 = scalar_lea.vmem %s6, %s315
      %s317 = smul.u32 %s24, %s23
      %s318 = smul.u32 4, %s317
      %s319 = ssub.s32 1, %s23
      %s320 = smul.u32 %s24, %s319
      %s321 = smul.u32 %s23, 2
      %s322 = sadd.s32 %s320, %s321
      %s323 = smul.u32 4, %s322
      %p324 = scmp.lt.s32.totalorder %s323, 11
      %s325 = scalar_select %p324, %s323, 11
      %s326 = smul.addr %s325, 8
      %s327 = scalar_lea.vmem %s7, %s326
      %s328 = ssub.s32 1, %s23
      %s329 = smul.u32 %s24, %s328
      %s330 = smul.u32 %s23, 2
      %s331 = sadd.s32 %s329, %s330
      %s332 = smul.u32 4, %s331
      %p334 = scmp.eq.s32.totalorder %s23, 0
      %p335 = scmp.eq.s32.totalorder %s24, 0
      %p336 = pnand %p334, %p335
      %p337 = pneg %p336
      // Predicated region
      $region45: #{gcn1_forward.1} parent=43 // pred_check
        _
      $region46: #{gcn1_forward.1} parent=43 // pred_check_branch
        %339 = sbr.rel (%p336) target = $region48
      $region47: #{gcn1_forward.1} parent=43 // pred_region
        %v340 = vld [vmem:[%s0] sm:$0xf]
        %v341 = vld [vmem:[%s0 + $0x4] sm:$0xf]
        %v342 = vld [vmem:[%s0 + $0x8] sm:$0xf]
        %v343 = vld [vmem:[%s0 + $0xc] sm:$0xf]
        %v344 = vld [vmem:[%s0 + $0x10] sm:$0xf]
        %v345 = vld [vmem:[%s0 + $0x14] sm:$0xf]
        %v346 = vld [vmem:[%s0 + $0x18] sm:$0xf]
        %v347 = vld [vmem:[%s0 + $0x1c] sm:$0xf]
        %v348 = vld [vmem:[%s0 + $0x20] sm:$0xf]
        %v349 = vld [vmem:[%s0 + $0x24] sm:$0xf]
        %v350 = vld [vmem:[%s0 + $0x28] sm:$0xf]
        %v351 = vld [vmem:[%s0 + $0x2c] sm:$0xf]
        %v352 = vld [vmem:[%s2] sm:$0xf]
        %v353 = vld [vmem:[%s2 + $0x4] sm:$0xf]
        %v354 = vld [vmem:[%s2 + $0x8] sm:$0xf]
        %v355 = vld [vmem:[%s2 + $0xc] sm:$0xf]
        %v356 = vld [vmem:[%s2 + $0x10] sm:$0xf]
        %v357 = vld [vmem:[%s2 + $0x14] sm:$0xf]
        %v358 = vld [vmem:[%s2 + $0x18] sm:$0xf]
        %v359 = vld [vmem:[%s2 + $0x1c] sm:$0xf]
        %v360 = vld [vmem:[%s2 + $0x20] sm:$0xf]
        %v361 = vld [vmem:[%s2 + $0x24] sm:$0xf]
        %v362 = vld [vmem:[%s2 + $0x28] sm:$0xf]
        %v363 = vld [vmem:[%s2 + $0x2c] sm:$0xf]
        %v364 = vld [vmem:[%s2 + $0x30] sm:$0xf]
        %v365 = vld [vmem:[%s2 + $0x34] sm:$0xf]
        %v366 = vld [vmem:[%s2 + $0x38] sm:$0xf]
        %v367 = vld [vmem:[%s2 + $0x3c] sm:$0xf]
        %v380 = vunpack.c.l.b16 %v340
        %v381 = vunpack.c.l.b16 %v341
        %v382 = vunpack.c.l.b16 %v342
        %v383 = vunpack.c.l.b16 %v343
        %v384 = vunpack.c.l.b16 %v344
        %v385 = vunpack.c.l.b16 %v345
        %v386 = vunpack.c.l.b16 %v346
        %v387 = vunpack.c.l.b16 %v347
        %v388 = vunpack.c.l.b16 %v348
        %v389 = vunpack.c.l.b16 %v349
        %v390 = vunpack.c.l.b16 %v350
        %v391 = vunpack.c.l.b16 %v351
        %v392 = vpack.c.b16 %v381, %v380
        %v393 = vpack.c.b16 %v383, %v382
        %v394 = vpack.c.b16 %v385, %v384
        %v395 = vpack.c.b16 %v387, %v386
        %v396 = vpack.c.b16 %v389, %v388
        %v397 = vpack.c.b16 %v391, %v390
        %v420 = vunpack.c.l.b16 %v352
        %v421 = vunpack.c.l.b16 %v353
        %v422 = vunpack.c.l.b16 %v354
        %v423 = vunpack.c.l.b16 %v355
        %v424 = vunpack.c.l.b16 %v356
        %v425 = vunpack.c.l.b16 %v357
        %v426 = vunpack.c.l.b16 %v358
        %v427 = vunpack.c.l.b16 %v359
        %v428 = vunpack.c.l.b16 %v360
        %v429 = vunpack.c.l.b16 %v361
        %v430 = vunpack.c.l.b16 %v362
        %v431 = vunpack.c.l.b16 %v363
        %v432 = vunpack.c.l.b16 %v364
        %v433 = vunpack.c.l.b16 %v365
        %v434 = vunpack.c.l.b16 %v366
        %v435 = vunpack.c.l.b16 %v367
        %v436 = vpack.c.b16 %v421, %v420
        %v437 = vpack.c.b16 %v423, %v422
        %v438 = vpack.c.b16 %v425, %v424
        %v439 = vpack.c.b16 %v427, %v426
        %v440 = vpack.c.b16 %v429, %v428
        %v441 = vpack.c.b16 %v431, %v430
        %v442 = vpack.c.b16 %v433, %v432
        %v443 = vpack.c.b16 %v435, %v434
        %452 = vmatprep.subr.bf16.mxu0 0
        %453 = vmatpush1.bf16.msra.mxu0 %v436
        %454 = vmatprep.subr.bf16.mxu0 0
        %455 = vmatpush1.bf16.msra.mxu0 %v437
        %456 = vmatprep.subr.bf16.mxu0 0
        %457 = vmatpush1.bf16.msra.mxu0 %v438
        %458 = vmatprep.subr.bf16.mxu0 0
        %459 = vmatpush1.bf16.msra.mxu0 %v439
        %460 = vmatprep.subr.bf16.mxu0 0
        %461 = vmatpush1.bf16.msra.mxu0 %v440
        %462 = vmatprep.subr.bf16.mxu0 0
        %463 = vmatpush1.bf16.msra.mxu0 %v441
        %464 = vmatprep.subr.bf16.mxu0 0
        %465 = vmatpush1.bf16.msra.mxu0 %v442
        %466 = vmatprep.subr.bf16.mxu0 0
        %467 = vmatpush1.bf16.msra.mxu0 %v443
        %468 = vmatprep.subr.bf16.mxu0 0
        %469 = vmatpush1.bf16.msra.mxu0 0
        %470 = vmatprep.subr.bf16.mxu0 0
        %471 = vmatpush1.bf16.msra.mxu0 0
        %472 = vmatprep.subr.bf16.mxu0 0
        %473 = vmatpush1.bf16.msra.mxu0 0
        %474 = vmatprep.subr.bf16.mxu0 0
        %475 = vmatpush1.bf16.msra.mxu0 0
        %476 = vmatprep.subr.bf16.mxu0 0
        %477 = vmatpush1.bf16.msra.mxu0 0
        %478 = vmatprep.subr.bf16.mxu0 0
        %479 = vmatpush1.bf16.msra.mxu0 0
        %480 = vmatprep.subr.bf16.mxu0 0
        %481 = vmatpush1.bf16.msra.mxu0 0
        %482 = vmatprep.subr.bf16.mxu0 0
        %483 = vmatpush1.bf16.msra.mxu0 0
        %484 = vmatprep.mubr.bf16.mxu0 0
        %485 = vmatmul.mubr.bf16.gmra.mrb[0].mxu0 %v392
        %v486 = vpop.f32.mrb[0].mxu0
        %v487 = vadd.f32 0.0, %v486
        %v488 = vpop.f32.mrb[0].mxu0
        %v489 = vpop.f32.mrb[0].mxu0
        %v490 = vadd.f32 0.0, %v489
        %v491 = vpop.f32.mrb[0].mxu0
        %492 = vmatprep.mubr.bf16.mxu0 0
        %493 = vmatmul.mubr.bf16.gmra.mrb[0].mxu0 %v393
        %v494 = vpop.f32.mrb[0].mxu0
        %v495 = vadd.f32 0.0, %v494
        %v496 = vpop.f32.mrb[0].mxu0
        %v497 = vpop.f32.mrb[0].mxu0
        %v498 = vadd.f32 0.0, %v497
        %v499 = vpop.f32.mrb[0].mxu0
        %500 = vmatprep.mubr.bf16.mxu0 0
        %501 = vmatmul.mubr.bf16.gmra.mrb[0].mxu0 %v394
        %v502 = vpop.f32.mrb[0].mxu0
        %v503 = vadd.f32 0.0, %v502
        %v504 = vpop.f32.mrb[0].mxu0
        %v505 = vpop.f32.mrb[0].mxu0
        %v506 = vadd.f32 0.0, %v505
        %v507 = vpop.f32.mrb[0].mxu0
        %508 = vmatprep.mubr.bf16.mxu0 0
        %509 = vmatmul.mubr.bf16.gmra.mrb[0].mxu0 %v395
        %v510 = vpop.f32.mrb[0].mxu0
        %v511 = vadd.f32 0.0, %v510
        %v512 = vpop.f32.mrb[0].mxu0
        %v513 = vpop.f32.mrb[0].mxu0
        %v514 = vadd.f32 0.0, %v513
        %v515 = vpop.f32.mrb[0].mxu0
        %516 = vmatprep.mubr.bf16.mxu0 0
        %517 = vmatmul.mubr.bf16.gmra.mrb[0].mxu0 %v396
        %v518 = vpop.f32.mrb[0].mxu0
        %v519 = vadd.f32 0.0, %v518
        %v520 = vpop.f32.mrb[0].mxu0
        %v521 = vpop.f32.mrb[0].mxu0
        %v522 = vadd.f32 0.0, %v521
        %v523 = vpop.f32.mrb[0].mxu0
        %524 = vmatprep.mubr.bf16.mxu0 0
        %525 = vmatmul.mubr.bf16.gmra.mrb[0].mxu0 %v397
        %v526 = vpop.f32.mrb[0].mxu0
        %v527 = vadd.f32 0.0, %v526
        %v528 = vpop.f32.mrb[0].mxu0
        %v529 = vpop.f32.mrb[0].mxu0
        %v530 = vadd.f32 0.0, %v529
        %v531 = vpop.f32.mrb[0].mxu0
        %532 = vdwg.mxu0
        %v533 = vpack.c.bf16 %v490, %v487
        %v534 = vpack.c.bf16 %v498, %v495
        %v535 = vpack.c.bf16 %v506, %v503
        %v536 = vpack.c.bf16 %v514, %v511
        %v537 = vpack.c.bf16 %v522, %v519
        %v538 = vpack.c.bf16 %v530, %v527
        %539 = vst [vmem:[#allocation2] sm:$0xff] %v533
        %540 = vst [vmem:[#allocation2 + $0x8] sm:$0xff] %v534
        %541 = vst [vmem:[#allocation2 + $0x10] sm:$0xff] %v535
        %542 = vst [vmem:[#allocation2 + $0x18] sm:$0xff] %v536
        %543 = vst [vmem:[#allocation2 + $0x20] sm:$0xff] %v537
        %544 = vst [vmem:[#allocation2 + $0x28] sm:$0xff] %v538
      $region48: #{gcn1_forward.1} parent=43 // pred_fallthru
        _
      // Predicated region
      $region49: #{gcn1_forward.1} parent=43 // pred_check
        %p545 = pneg %p334
      $region50: #{gcn1_forward.1} parent=43 // pred_check_branch
        %547 = sbr.rel (%p545) target = $region52
      $region51: #{gcn1_forward.1} parent=43 // pred_region
        %v548 = vld [vmem:[%s309] sm:$0xf]
        %v549 = vld [vmem:[%s309 + $0x4] sm:$0xf]
        %v550 = vld [vmem:[%s309 + $0x8] sm:$0xf]
        %v551 = vld [vmem:[%s309 + $0xc] sm:$0xf]
        %v552 = vld [vmem:[#allocation2] sm:$0xff]
        %v553 = vld [vmem:[#allocation2 + $0x8] sm:$0xff]
        %v554 = vld [vmem:[#allocation2 + $0x10] sm:$0xff]
        %v555 = vld [vmem:[#allocation2 + $0x18] sm:$0xff]
        %v556 = vld [vmem:[#allocation2 + $0x20] sm:$0xff]
        %v557 = vld [vmem:[#allocation2 + $0x28] sm:$0xff]
        %v558 = vld [vmem:[%s3] sm:$0x1]
        %v560 = vlaneseq
        %v561 = vshrl.u32 %v560, 7
        %v562 = vsub.s32 0, %v561
        %v563 = vrot.slane %v558, %v562
        %v569 = vunpack.c.l.b16 %v548
        %v570 = vunpack.c.l.b16 %v549
        %v571 = vunpack.c.l.b16 %v550
        %v572 = vunpack.c.l.b16 %v551
        %v573 = vpack.c.b16 %v570, %v569
        %v574 = vpack.c.b16 %v572, %v571
        %vm575 = vcmask 785408
        %v577 = vsel %vm575, %v573, 0
        %v580 = vsel %vm575, %v574, 0
        %582 = vmatprep.subr.bf16.mxu0 0
        %583 = vmatpush1.bf16.msra.mxu0 %v552
        %584 = vmatprep.subr.bf16.mxu0 0
        %585 = vmatpush1.bf16.msra.mxu0 %v553
        %586 = vmatprep.subr.bf16.mxu0 0
        %587 = vmatpush1.bf16.msra.mxu0 %v554
        %588 = vmatprep.subr.bf16.mxu0 0
        %589 = vmatpush1.bf16.msra.mxu0 %v555
        %590 = vmatprep.subr.bf16.mxu0 0
        %591 = vmatpush1.bf16.msra.mxu0 %v556
        %592 = vmatprep.subr.bf16.mxu0 0
        %593 = vmatpush1.bf16.msra.mxu0 %v557
        %594 = vmatprep.subr.bf16.mxu0 0
        %595 = vmatpush1.bf16.msra.mxu0 0
        %596 = vmatprep.subr.bf16.mxu0 0
        %597 = vmatpush1.bf16.msra.mxu0 0
        %598 = vmatprep.subr.bf16.mxu0 0
        %599 = vmatpush1.bf16.msra.mxu0 0
        %600 = vmatprep.subr.bf16.mxu0 0
        %601 = vmatpush1.bf16.msra.mxu0 0
        %602 = vmatprep.subr.bf16.mxu0 0
        %603 = vmatpush1.bf16.msra.mxu0 0
        %604 = vmatprep.subr.bf16.mxu0 0
        %605 = vmatpush1.bf16.msra.mxu0 0
        %606 = vmatprep.subr.bf16.mxu0 0
        %607 = vmatpush1.bf16.msra.mxu0 0
        %608 = vmatprep.subr.bf16.mxu0 0
        %609 = vmatpush1.bf16.msra.mxu0 0
        %610 = vmatprep.subr.bf16.mxu0 0
        %611 = vmatpush1.bf16.msra.mxu0 0
        %612 = vmatprep.subr.bf16.mxu0 0
        %613 = vmatpush1.bf16.msra.mxu0 0
        %614 = vmatprep.mubr.bf16.mxu0 0
        %615 = vmatmul.mubr.bf16.gmra.mrb[0].mxu0 %v577
        %v616 = vpop.f32.mrb[0].mxu0
        %v617 = vadd.f32 %v563, %v616
        %v618 = vpop.f32.mrb[0].mxu0
        %v619 = vpop.f32.mrb[0].mxu0
        %v620 = vadd.f32 %v563, %v619
        %v621 = vpop.f32.mrb[0].mxu0
        %622 = vmatprep.mubr.bf16.mxu0 0
        %623 = vmatmul.mubr.bf16.gmra.mrb[0].mxu0 %v580
        %v624 = vpop.f32.mrb[0].mxu0
        %v625 = vadd.f32 %v563, %v624
        %v626 = vpop.f32.mrb[0].mxu0
        %v627 = vpop.f32.mrb[0].mxu0
        %v628 = vadd.f32 %v563, %v627
        %v629 = vpop.f32.mrb[0].mxu0
        %630 = vdwg.mxu0
        %v631 = vmax.f32 %v617, 0.0
        %v632 = vmax.f32 %v620, 0.0
        %v633 = vmax.f32 %v625, 0.0
        %v634 = vmax.f32 %v628, 0.0
        %635 = vst [vmem:[%s327] sm:$0xff] %v631
        %636 = vst [vmem:[%s327 + $0x8] sm:$0xff] %v632
        %637 = vst [vmem:[%s327 + $0x10] sm:$0xff] %v633
        %638 = vst [vmem:[%s327 + $0x18] sm:$0xff] %v634
        %v639 = vpack.c.bf16 %v632, %v631
        %v640 = vpack.c.bf16 %v634, %v633
        %v641 = vld [vmem:[%s4] sm:$0xf]
        %v642 = vld [vmem:[%s4 + $0x4] sm:$0xf]
        %v643 = vld [vmem:[%s4 + $0x8] sm:$0xf]
        %v644 = vld [vmem:[%s4 + $0xc] sm:$0xf]
        %v645 = vld [vmem:[%s4 + $0x10] sm:$0xf]
        %v646 = vld [vmem:[%s4 + $0x14] sm:$0xf]
        %v647 = vld [vmem:[%s4 + $0x18] sm:$0xf]
        %v648 = vld [vmem:[%s4 + $0x1c] sm:$0xf]
        %v649 = vld [vmem:[%s4 + $0x20] sm:$0xf]
        %v650 = vld [vmem:[%s4 + $0x24] sm:$0xf]
        %v651 = vld [vmem:[%s4 + $0x28] sm:$0xf]
        %v652 = vld [vmem:[%s4 + $0x2c] sm:$0xf]
        %v653 = vld [vmem:[%s4 + $0x30] sm:$0xf]
        %v654 = vld [vmem:[%s4 + $0x34] sm:$0xf]
        %v655 = vld [vmem:[%s4 + $0x38] sm:$0xf]
        %v656 = vld [vmem:[%s4 + $0x3c] sm:$0xf]
        %v673 = vunpack.c.l.b16 %v641
        %v674 = vunpack.c.l.b16 %v642
        %v675 = vunpack.c.l.b16 %v643
        %v676 = vunpack.c.l.b16 %v644
        %v677 = vunpack.c.l.b16 %v645
        %v678 = vunpack.c.l.b16 %v646
        %v679 = vunpack.c.l.b16 %v647
        %v680 = vunpack.c.l.b16 %v648
        %v681 = vunpack.c.l.b16 %v649
        %v682 = vunpack.c.l.b16 %v650
        %v683 = vunpack.c.l.b16 %v651
        %v684 = vunpack.c.l.b16 %v652
        %v685 = vunpack.c.l.b16 %v653
        %v686 = vunpack.c.l.b16 %v654
        %v687 = vunpack.c.l.b16 %v655
        %v688 = vunpack.c.l.b16 %v656
        %v689 = vpack.c.b16 %v674, %v673
        %v690 = vpack.c.b16 %v676, %v675
        %v691 = vpack.c.b16 %v678, %v677
        %v692 = vpack.c.b16 %v680, %v679
        %v693 = vpack.c.b16 %v682, %v681
        %v694 = vpack.c.b16 %v684, %v683
        %v695 = vpack.c.b16 %v686, %v685
        %v696 = vpack.c.b16 %v688, %v687
        %705 = vmatprep.subr.bf16.mxu0 0
        %706 = vmatpush1.bf16.msra.mxu0 %v689
        %707 = vmatprep.subr.bf16.mxu0 0
        %708 = vmatpush1.bf16.msra.mxu0 %v690
        %709 = vmatprep.subr.bf16.mxu0 0
        %710 = vmatpush1.bf16.msra.mxu0 %v691
        %711 = vmatprep.subr.bf16.mxu0 0
        %712 = vmatpush1.bf16.msra.mxu0 %v692
        %713 = vmatprep.subr.bf16.mxu0 0
        %714 = vmatpush1.bf16.msra.mxu0 %v693
        %715 = vmatprep.subr.bf16.mxu0 0
        %716 = vmatpush1.bf16.msra.mxu0 %v694
        %717 = vmatprep.subr.bf16.mxu0 0
        %718 = vmatpush1.bf16.msra.mxu0 %v695
        %719 = vmatprep.subr.bf16.mxu0 0
        %720 = vmatpush1.bf16.msra.mxu0 %v696
        %721 = vmatprep.subr.bf16.mxu0 0
        %722 = vmatpush1.bf16.msra.mxu0 0
        %723 = vmatprep.subr.bf16.mxu0 0
        %724 = vmatpush1.bf16.msra.mxu0 0
        %725 = vmatprep.subr.bf16.mxu0 0
        %726 = vmatpush1.bf16.msra.mxu0 0
        %727 = vmatprep.subr.bf16.mxu0 0
        %728 = vmatpush1.bf16.msra.mxu0 0
        %729 = vmatprep.subr.bf16.mxu0 0
        %730 = vmatpush1.bf16.msra.mxu0 0
        %731 = vmatprep.subr.bf16.mxu0 0
        %732 = vmatpush1.bf16.msra.mxu0 0
        %733 = vmatprep.subr.bf16.mxu0 0
        %734 = vmatpush1.bf16.msra.mxu0 0
        %735 = vmatprep.subr.bf16.mxu0 0
        %736 = vmatpush1.bf16.msra.mxu0 0
        %737 = vmatprep.mubr.bf16.mxu0 0
        %738 = vmatmul.mubr.bf16.gmra.mrb[0].mxu0 %v639
        %v739 = vpop.f32.mrb[0].mxu0
        %v740 = vadd.f32 0.0, %v739
        %v741 = vpop.f32.mrb[0].mxu0
        %v742 = vpop.f32.mrb[0].mxu0
        %v743 = vadd.f32 0.0, %v742
        %v744 = vpop.f32.mrb[0].mxu0
        %745 = vmatprep.mubr.bf16.mxu0 0
        %746 = vmatmul.mubr.bf16.gmra.mrb[0].mxu0 %v640
        %v747 = vpop.f32.mrb[0].mxu0
        %v748 = vadd.f32 0.0, %v747
        %v749 = vpop.f32.mrb[0].mxu0
        %v750 = vpop.f32.mrb[0].mxu0
        %v751 = vadd.f32 0.0, %v750
        %v752 = vpop.f32.mrb[0].mxu0
        %753 = vdwg.mxu0
        %s754 = smul.u32 %s24, 32
        %s755 = scalar_lea.vmem [#allocation3], %s754
        %756 = vst [vmem:[%s755] sm:$0xff] %v740
        %757 = vst [vmem:[%s755 + $0x8] sm:$0xff] %v743
        %758 = vst [vmem:[%s755 + $0x10] sm:$0xff] %v748
        %759 = vst [vmem:[%s755 + $0x18] sm:$0xff] %v751
      $region52: #{gcn1_forward.1} parent=43 // pred_fallthru
        _
      %p760 = scmp.eq.s32.totalorder %s23, 1
      // Predicated region
      $region53: #{gcn1_forward.1} parent=43 // pred_check
        %p761 = pneg %p760
      $region54: #{gcn1_forward.1} parent=43 // pred_check_branch
        %763 = sbr.rel (%p761) target = $region56
      $region55: #{gcn1_forward.1} parent=43 // pred_region
        %v764 = vld [vmem:[%s309] sm:$0xf]
        %v765 = vld [vmem:[%s309 + $0x4] sm:$0xf]
        %v766 = vld [vmem:[%s309 + $0x8] sm:$0xf]
        %v767 = vld [vmem:[%s309 + $0xc] sm:$0xf]
        %v768 = vld [vmem:[#allocation3] sm:$0xff]
        %v769 = vld [vmem:[#allocation3 + $0x8] sm:$0xff]
        %v770 = vld [vmem:[#allocation3 + $0x10] sm:$0xff]
        %v771 = vld [vmem:[#allocation3 + $0x18] sm:$0xff]
        %v772 = vld [vmem:[#allocation3 + $0x20] sm:$0xff]
        %v773 = vld [vmem:[#allocation3 + $0x28] sm:$0xff]
        %v774 = vld [vmem:[#allocation3 + $0x30] sm:$0xff]
        %v775 = vld [vmem:[#allocation3 + $0x38] sm:$0xff]
        %v776 = vld [vmem:[#allocation3 + $0x40] sm:$0xff]
        %v777 = vld [vmem:[#allocation3 + $0x48] sm:$0xff]
        %v778 = vld [vmem:[#allocation3 + $0x50] sm:$0xff]
        %v779 = vld [vmem:[#allocation3 + $0x58] sm:$0xff]
        %v780 = vpack.c.bf16 %v769, %v768
        %v781 = vpack.c.bf16 %v771, %v770
        %v782 = vpack.c.bf16 %v773, %v772
        %v783 = vpack.c.bf16 %v775, %v774
        %v784 = vpack.c.bf16 %v777, %v776
        %v785 = vpack.c.bf16 %v779, %v778
        %v786 = vld [vmem:[%s5] sm:$0x1]
        %v788 = vlaneseq
        %v789 = vshrl.u32 %v788, 7
        %v790 = vsub.s32 0, %v789
        %v791 = vrot.slane %v786, %v790
        %v797 = vunpack.c.l.b16 %v764
        %v798 = vunpack.c.l.b16 %v765
        %v799 = vunpack.c.l.b16 %v766
        %v800 = vunpack.c.l.b16 %v767
        %v801 = vpack.c.b16 %v798, %v797
        %v802 = vpack.c.b16 %v800, %v799
        %vm803 = vcmask 785408
        %v805 = vsel %vm803, %v801, 0
        %v808 = vsel %vm803, %v802, 0
        %810 = vmatprep.subr.bf16.mxu0 0
        %811 = vmatpush1.bf16.msra.mxu0 %v780
        %812 = vmatprep.subr.bf16.mxu0 0
        %813 = vmatpush1.bf16.msra.mxu0 %v781
        %814 = vmatprep.subr.bf16.mxu0 0
        %815 = vmatpush1.bf16.msra.mxu0 %v782
        %816 = vmatprep.subr.bf16.mxu0 0
        %817 = vmatpush1.bf16.msra.mxu0 %v783
        %818 = vmatprep.subr.bf16.mxu0 0
        %819 = vmatpush1.bf16.msra.mxu0 %v784
        %820 = vmatprep.subr.bf16.mxu0 0
        %821 = vmatpush1.bf16.msra.mxu0 %v785
        %822 = vmatprep.subr.bf16.mxu0 0
        %823 = vmatpush1.bf16.msra.mxu0 0
        %824 = vmatprep.subr.bf16.mxu0 0
        %825 = vmatpush1.bf16.msra.mxu0 0
        %826 = vmatprep.subr.bf16.mxu0 0
        %827 = vmatpush1.bf16.msra.mxu0 0
        %828 = vmatprep.subr.bf16.mxu0 0
        %829 = vmatpush1.bf16.msra.mxu0 0
        %830 = vmatprep.subr.bf16.mxu0 0
        %831 = vmatpush1.bf16.msra.mxu0 0
        %832 = vmatprep.subr.bf16.mxu0 0
        %833 = vmatpush1.bf16.msra.mxu0 0
        %834 = vmatprep.subr.bf16.mxu0 0
        %835 = vmatpush1.bf16.msra.mxu0 0
        %836 = vmatprep.subr.bf16.mxu0 0
        %837 = vmatpush1.bf16.msra.mxu0 0
        %838 = vmatprep.subr.bf16.mxu0 0
        %839 = vmatpush1.bf16.msra.mxu0 0
        %840 = vmatprep.subr.bf16.mxu0 0
        %841 = vmatpush1.bf16.msra.mxu0 0
        %842 = vmatprep.mubr.bf16.mxu0 0
        %843 = vmatmul.mubr.bf16.gmra.mrb[0].mxu0 %v805
        %v844 = vpop.f32.mrb[0].mxu0
        %v845 = vadd.f32 %v791, %v844
        %v846 = vpop.f32.mrb[0].mxu0
        %v847 = vpop.f32.mrb[0].mxu0
        %v848 = vadd.f32 %v791, %v847
        %v849 = vpop.f32.mrb[0].mxu0
        %850 = vmatprep.mubr.bf16.mxu0 0
        %851 = vmatmul.mubr.bf16.gmra.mrb[0].mxu0 %v808
        %v852 = vpop.f32.mrb[0].mxu0
        %v853 = vadd.f32 %v791, %v852
        %v854 = vpop.f32.mrb[0].mxu0
        %v855 = vpop.f32.mrb[0].mxu0
        %v856 = vadd.f32 %v791, %v855
        %v857 = vpop.f32.mrb[0].mxu0
        %858 = vdwg.mxu0
        %v859 = vlaneseq
        %v860 = vand.u32 %v859, 127
        %vm861 = vcmp.lt.s32.totalorder %v860, 8
        %v862 = vsel %vm861, %v845, -1e+30
        %v863 = vsel %vm861, %v848, -1e+30
        %v864 = vsel %vm861, %v853, -1e+30
        %v865 = vsel %vm861, %v856, -1e+30
        %866 = vmax.xlane.f32.xlu0 %v862
        %v867 = vpop.xlane.xlu0 %866
        %868 = vmax.xlane.f32.xlu0 %v863
        %v869 = vpop.xlane.xlu0 %868
        %870 = vmax.xlane.f32.xlu0 %v864
        %v871 = vpop.xlane.xlu0 %870
        %872 = vmax.xlane.f32.xlu0 %v865
        %v873 = vpop.xlane.xlu0 %872
        %v874 = vsub.f32 %v862, %v867
        %v875 = vsub.f32 %v863, %v869
        %v876 = vsub.f32 %v864, %v871
        %v877 = vsub.f32 %v865, %v873
        %v878 = vmul.f32 %v874, 1.442695
        %v879 = vpow.pop %v878
        %v880 = vmul.f32 %v875, 1.442695
        %v881 = vpow.pop %v880
        %v882 = vmul.f32 %v876, 1.442695
        %v883 = vpow.pop %v882
        %v884 = vmul.f32 %v877, 1.442695
        %v885 = vpow.pop %v884
        %886 = vadd.xlane.f32.xlu0 %v879
        %v887 = vpop.xlane.xlu0 %886
        %888 = vadd.xlane.f32.xlu0 %v881
        %v889 = vpop.xlane.xlu0 %888
        %890 = vadd.xlane.f32.xlu0 %v883
        %v891 = vpop.xlane.xlu0 %890
        %892 = vadd.xlane.f32.xlu0 %v885
        %v893 = vpop.xlane.xlu0 %892
        %v894 = vlog2.pop %v887
        %v895 = vmul.f32 %v894, 0.6931472
        %v896 = vlog2.pop %v889
        %v897 = vmul.f32 %v896, 0.6931472
        %v898 = vlog2.pop %v891
        %v899 = vmul.f32 %v898, 0.6931472
        %v900 = vlog2.pop %v893
        %v901 = vmul.f32 %v900, 0.6931472
        %v902 = vadd.f32 %v867, %v895
        %v903 = vadd.f32 %v869, %v897
        %v904 = vadd.f32 %v871, %v899
        %v905 = vadd.f32 %v873, %v901
        %v906 = vsub.f32 %v862, %v902
        %v907 = vsub.f32 %v863, %v903
        %v908 = vsub.f32 %v864, %v904
        %v909 = vsub.f32 %v865, %v905
        %910 = vst [vmem:[%s316] sm:$0xff] %v906
        %911 = vst [vmem:[%s316 + $0x8] sm:$0xff] %v907
        %912 = vst [vmem:[%s316 + $0x10] sm:$0xff] %v908
        %913 = vst [vmem:[%s316 + $0x18] sm:$0xff] %v909
      $region56: #{gcn1_forward.1} parent=43 // pred_fallthru
        _
      %s914 = smul.u32 %s24, %s23
      %s915 = smul.u32 4, %s914
      %p916 = scmp.lt.s32.totalorder %s915, 11
      %s917 = scalar_select %p916, %s915, 11
      %s918 = smul.addr %s917, 8
      %s919 = scalar_lea.vmem %s6, %s918
      %s920 = ssub.s32 1, %s23
      %s921 = smul.u32 %s24, %s920
      %s922 = smul.u32 %s23, 2
      %s923 = sadd.s32 %s921, %s922
      %s924 = smul.u32 4, %s923
      %p925 = scmp.lt.s32.totalorder %s924, 11
      %s926 = scalar_select %p925, %s924, 11
      %s927 = smul.addr %s926, 8
      %s928 = scalar_lea.vmem %s7, %s927
      // Predicated region
      $region57: #{gcn1_forward.1} parent=43 // pred_check
        %p929 = pneg %p182
      $region58: #{gcn1_forward.1} parent=43 // pred_check_branch
        %931 = sbr.rel (%p929) target = $region60
      $region59: #{gcn1_forward.1} parent=43 // pred_region
        %s932 = smul.u32 %s24, %s23
        %s933 = smul.u32 4, %s932
      $region60: #{gcn1_forward.1} parent=43 // pred_fallthru
        _
      // Predicated region
      $region61: #{gcn1_forward.1} parent=43 // pred_check
        %p934 = pneg %p216
      $region62: #{gcn1_forward.1} parent=43 // pred_check_branch
        %936 = sbr.rel (%p934) target = $region64
      $region63: #{gcn1_forward.1} parent=43 // pred_region
        %s937 = ssub.s32 1, %s23
        %s938 = smul.u32 %s24, %s937
        %s939 = smul.u32 %s23, 2
        %s940 = sadd.s32 %s938, %s939
        %s941 = smul.u32 4, %s940
      $region64: #{gcn1_forward.1} parent=43 // pred_fallthru
        _
    $region44: #{gcn1_forward.1} parent=5 // pred_fallthru
      _
    %p942 = scmp.le.s32.totalorder 2, %s14
    // Predicated region
    $region65: #{gcn1_forward.1} parent=5 // pred_check
      %p943 = pneg %p942
    $region66: #{gcn1_forward.1} parent=5 // pred_check_branch
      %945 = sbr.rel (%p943) target = $region68
    $region67: #{gcn1_forward.1} parent=5 // pred_region
      %s946 = ssub.s32 %s14, 2
      // Predicated region
      $region69: #{gcn1_forward.1} parent=67 // pred_check
        %p947 = pneg %p188
      $region70: #{gcn1_forward.1} parent=67 // pred_check_branch
        %949 = sbr.rel (%p947) target = $region72
      $region71: #{gcn1_forward.1} parent=67 // pred_region
        %s950 = smul.u32 %s26, %s25
        %s951 = smul.u32 4, %s950
        %p952 = scmp.lt.s32.totalorder %s951, 11
        %s953 = scalar_select %p952, %s951, 11
        %s954 = smul.addr %s953, 8
        %s955 = scalar_lea.vmem %s6, %s954
      $region72: #{gcn1_forward.1} parent=67 // pred_fallthru
        _
      // Predicated region
      $region73: #{gcn1_forward.1} parent=67 // pred_check
        %p956 = pneg %p222
      $region74: #{gcn1_forward.1} parent=67 // pred_check_branch
        %958 = sbr.rel (%p956) target = $region76
      $region75: #{gcn1_forward.1} parent=67 // pred_region
        %s959 = ssub.s32 1, %s25
        %s960 = smul.u32 %s26, %s959
        %s961 = smul.u32 %s25, 2
        %s962 = sadd.s32 %s960, %s961
        %s963 = smul.u32 4, %s962
        %p964 = scmp.lt.s32.totalorder %s963, 11
        %s965 = scalar_select %p964, %s963, 11
        %s966 = smul.addr %s965, 8
        %s967 = scalar_lea.vmem %s7, %s966
      $region76: #{gcn1_forward.1} parent=67 // pred_fallthru
        _
    $region68: #{gcn1_forward.1} parent=5 // pred_fallthru
      _
  $region6: #{gcn1_forward.1} parent=0 // loop_footer
    %s18 = sadd.s32 1, %s14
  $region7: #{gcn1_forward.1} parent=0 // loop_footer_branch
    %13 = sbr.rel target = $region3
  $region8: #{gcn1_forward.1} parent=0 // loop_exit
    _

</llo_original>
